<compile_context>
chip_gen: v7x
topology: tpu7x:2x2x1
jax: 0.10.0
libtpu: 0.0.40
codegen_flags: <defaults>
</compile_context>

<pallas_src>
import functools

import jax
import jax.numpy as jnp
import numpy as np
from jax.experimental import pallas as pl
from jax.experimental.pallas import tpu as pltpu


def sgrn_kernel(x_ref, wx_ref, wg_ref, const_ref, o_ref, *, f_out):
    """One row-tile of the fused SGRN forward.

    x_ref:     (tm, f_in)            caller dtype (f32 or bf16)
    wx_ref:    (f_in, 2*fp)  bf16    = [W1 | Wr * gate]          (fp = f_out padded to 128)
    wg_ref:    (fp, 2*fp)    bf16    = [Wa | Wb]                 (GLU linear)
    const_ref: (8, 2*fp)     f32     row0=[b1 | br*gate], row1=[ba | bb],
                                     row2=[gamma | 0],   row3=[beta | 0]
    o_ref:     (tm, fp)
    f_out:     true (un-padded) feature count, used as the LayerNorm divisor.
    """
    fp = o_ref.shape[-1]
    x = x_ref[...].astype(jnp.bfloat16)          # bf16 MXU fast path; accumulate in f32

    # --- fused x-projection: [lin1 | resample] in one 2*fp-wide MXU pass ---
    t = jnp.dot(x, wx_ref[...], preferred_element_type=jnp.float32) + const_ref[0:1, :]
    t = jnp.maximum(t, 0.0)                      # ReLU applies to both halves
    h = t[:, :fp].astype(jnp.bfloat16)           # lin1 output (bf16 for the next matmul)
    r = t[:, fp:]                                # residual (gate folded into weights), f32

    # --- GatedLinearUnit: single (fp -> 2*fp) matmul, then glu(dim=-1) ---
    # All slices are 128-lane aligned because fp is a multiple of 128.
    g = jnp.dot(h, wg_ref[...], preferred_element_type=jnp.float32) + const_ref[1:2, :]
    y = g[:, :fp] * jax.nn.sigmoid(g[:, fp:]) + r   # GLU + residual add (pad lanes stay 0)

    # --- one-pass LayerNorm over the real f_out features (pad lanes of y are exactly 0,
    #     so full-width reductions equal reductions over the first f_out lanes) ---
    inv_n = 1.0 / float(f_out)
    s1 = jnp.sum(y, axis=-1, keepdims=True)
    s2 = jnp.sum(y * y, axis=-1, keepdims=True)
    mean = s1 * inv_n
    var = jnp.maximum(s2 * inv_n - mean * mean, 0.0)
    y = (y - mean) * jax.lax.rsqrt(var + 1e-5)
    # gamma/beta are zero in the pad lanes -> output pad lanes are exactly 0.
    y = y * const_ref[2:3, :fp] + const_ref[3:4, :fp]

    o_ref[...] = y.astype(o_ref.dtype)


def _round_up(a, b):
    return ((a + b - 1) // b) * b


def _prep_params(params, f_out_pad):
    """One-time parameter fusion / lane padding (outside the hot loop)."""
    f_out = params["w1"].shape[1]
    pad_o = f_out_pad - f_out

    def pad_cols(w):  # zero-pad the last dim to f_out_pad
        return jnp.pad(w, ((0, 0), (0, pad_o))) if pad_o else w

    gate = 2.0 * jax.nn.sigmoid(params["mask_r"])                        # (1, f_out), > 0
    wx = jnp.concatenate(
        [pad_cols(params["w1"]), pad_cols(params["wr"] * gate)], axis=1  # (f_in, 2*fp)
    ).astype(jnp.bfloat16)

    wg = jnp.concatenate([pad_cols(params["wa"]), pad_cols(params["wb"])], axis=1)
    if pad_o:                                                            # pad K dim too
        wg = jnp.pad(wg, ((0, pad_o), (0, 0)))
    wg = wg.astype(jnp.bfloat16)                                         # (fp, 2*fp)

    const = jnp.zeros((8, 2 * f_out_pad), jnp.float32)
    const = const.at[0, :].set(
        jnp.concatenate([pad_cols(params["b1"]), pad_cols(params["br"] * gate)], axis=1)[0])
    const = const.at[1, :].set(
        jnp.concatenate([pad_cols(params["ba"]), pad_cols(params["bb"])], axis=1)[0])
    const = const.at[2, :f_out].set(params["gamma"][0])
    const = const.at[3, :f_out].set(params["beta"][0])
    return wx, wg, const


def sgrn_forward(x, params, *, tm=512):
    """x: (N, F_in) float32 (or bf16). Returns (N, F_out) in x.dtype."""
    n, f_in = x.shape
    f_out = params["w1"].shape[1]
    fp = _round_up(f_out, 128)                     # lane-dense feature width

    wx, wg, const = _prep_params(params, fp)

    # ---- row tiling: no jnp.pad of x, no rounding N up to a full tile.
    #      At least 4 grid steps when N allows (v7x has 2 TCs; also restores x double
    #      buffering); the ragged edge block is clipped by Pallas. ----
    n_pad8 = _round_up(n, 8)
    n_tiles = max(pl.cdiv(n_pad8, tm), min(4, n_pad8 // 8))
    tm_eff = _round_up(pl.cdiv(n_pad8, n_tiles), 8)
    grid = (pl.cdiv(n, tm_eff),)

    # Single-buffer the constant-index weight blocks only when they are big enough to
    # threaten VMEM (e.g. large f_in/f_out on v7x's 64 MiB VMEM); tiny weights keep the
    # default double-buffering.
    weight_bytes = wx.size * wx.dtype.itemsize + wg.size * wg.dtype.itemsize
    wmode = {"pipeline_mode": pl.Buffered(1)} if weight_bytes > (4 << 20) else {}
    # NOTE: for very large feature dims also raise vmem_limit_bytes via CompilerParams.

    out = pl.pallas_call(
        functools.partial(sgrn_kernel, f_out=f_out),
        out_shape=jax.ShapeDtypeStruct((n, fp), x.dtype),
        grid_spec=pltpu.PrefetchScalarGridSpec(
            num_scalar_prefetch=0,
            grid=grid,
            in_specs=[
                pl.BlockSpec((tm_eff, f_in), lambda i: (i, 0)),            # x row tile
                pl.BlockSpec((f_in, 2 * fp), lambda i: (0, 0), **wmode),   # [W1 | Wr*g] bf16
                pl.BlockSpec((fp, 2 * fp), lambda i: (0, 0), **wmode),     # [Wa | Wb]   bf16
                pl.BlockSpec((8, 2 * fp), lambda i: (0, 0), **wmode),      # biases/LN params
            ],
            out_specs=pl.BlockSpec((tm_eff, fp), lambda i: (i, 0)),
        ),
        compiler_params=pltpu.CompilerParams(
            dimension_semantics=("parallel",)),
    )(x, wx, wg, const)

    # Pad lanes are exact zeros; downstream code may consume the padded slab directly.
    return out[:, :f_out] if fp != f_out else out


def sgrn_reference(x, p):
    """Pure-JAX f32 reference of the module forward (unfused parameterization)."""
    r = jnp.maximum(x @ p["wr"] + p["br"], 0.0)
    r = r * jax.nn.sigmoid(p["mask_r"]) * 2.0
    h = jnp.maximum(x @ p["w1"] + p["b1"], 0.0)
    a = h @ p["wa"] + p["ba"]
    b = h @ p["wb"] + p["bb"]
    y = a * jax.nn.sigmoid(b) + r
    mean = jnp.mean(y, axis=-1, keepdims=True)
    var = jnp.mean((y - mean) ** 2, axis=-1, keepdims=True)
    y = (y - mean) / jnp.sqrt(var + 1e-5)
    return y * p["gamma"] + p["beta"]


def make_params(key, f_in, f_out):
    ks = jax.random.split(key, 10)
    s_in = 1.0 / np.sqrt(f_in)
    s_out = 1.0 / np.sqrt(f_out)
    return {
        "w1": jax.random.uniform(ks[0], (f_in, f_out), jnp.float32, -s_in, s_in),
        "b1": jax.random.uniform(ks[1], (1, f_out), jnp.float32, -s_in, s_in),
        "wa": jax.random.uniform(ks[2], (f_out, f_out), jnp.float32, -s_out, s_out),
        "ba": jax.random.uniform(ks[3], (1, f_out), jnp.float32, -s_out, s_out),
        "wb": jax.random.uniform(ks[4], (f_out, f_out), jnp.float32, -s_out, s_out),
        "bb": jax.random.uniform(ks[5], (1, f_out), jnp.float32, -s_out, s_out),
        "wr": jax.random.uniform(ks[6], (f_in, f_out), jnp.float32, -s_in, s_in),
        "br": jax.random.uniform(ks[7], (1, f_out), jnp.float32, -s_in, s_in),
        # PyTorch inits the trainable mask to zeros (sigmoid(0)*2 == 1); use a
        # small random value so the gate actually does something in the test.
        "mask_r": 0.1 * jax.random.normal(ks[8], (1, f_out), jnp.float32),
        "gamma": jnp.ones((1, f_out), jnp.float32),
        "beta": jnp.zeros((1, f_out), jnp.float32),
    }


if __name__ == "__main__":
    batch, seq = 2, 8
    f_in, f_out = 32, 64
    key = jax.random.PRNGKey(0)
    kx, kp = jax.random.split(key)

    x = jax.random.normal(kx, (batch, seq, f_in), jnp.float32)
    params = make_params(kp, f_in, f_out)

    x2d = x.reshape(batch * seq, f_in)           # layout: (N, F_in), features on lanes
    out = sgrn_forward(x2d, params)
    out = jax.block_until_ready(out).reshape(batch, seq, f_out)

    # Reference is pure f32; the kernel feeds the MXU bf16 (per perf review), so allow
    # bf16-level rounding in the comparison.  LayerNorm output values are O(1).
    ref = sgrn_reference(x2d, params).reshape(batch, seq, f_out)
    np.testing.assert_allclose(np.asarray(out), np.asarray(ref), rtol=3e-2, atol=3e-2)

    print("KERNEL_OK")
</pallas_src>

<mosaic_0001>
module attributes {stable_mosaic.version = 11 : i64} {
  func.func @sgrn_kernel(%arg0: i32, %arg1: memref<8x32xf32, #tpu.memory_space<vmem>>, %arg2: memref<32x256xbf16, #tpu.memory_space<vmem>>, %arg3: memref<128x256xbf16, #tpu.memory_space<vmem>>, %arg4: memref<8x256xf32, #tpu.memory_space<vmem>>, %arg5: memref<8x128xf32, #tpu.memory_space<vmem>>) attributes {dimension_semantics = [#tpu.dimension_semantics<parallel>], iteration_bounds = array<i64: 2>, scalar_prefetch = 0 : i64, scratch_operands = 0 : i64, tpu.core_type = #tpu.core_type<tc>, window_params = [{transform_indices = @transform_0, window_bounds = array<i64: 8, 32>}, {pipeline_mode = #tpu.pipeline_mode<synchronous>, transform_indices = @transform_1, window_bounds = array<i64: 32, 256>}, {pipeline_mode = #tpu.pipeline_mode<synchronous>, transform_indices = @transform_2, window_bounds = array<i64: 128, 256>}, {pipeline_mode = #tpu.pipeline_mode<synchronous>, transform_indices = @transform_3, window_bounds = array<i64: 8, 256>}, {transform_indices = @transform_4, window_bounds = array<i64: 8, 128>}]} {
    %c0 = arith.constant 0 : index
    %c0_0 = arith.constant 0 : index
    %0 = vector.load %arg1[%c0, %c0_0] : memref<8x32xf32, #tpu.memory_space<vmem>>, vector<8x32xf32>
    %1 = arith.truncf %0 : vector<8x32xf32> to vector<8x32xbf16>
    %c0_1 = arith.constant 0 : index
    %c0_2 = arith.constant 0 : index
    %2 = vector.load %arg2[%c0_1, %c0_2] : memref<32x256xbf16, #tpu.memory_space<vmem>>, vector<32x256xbf16>
    %cst = arith.constant dense<0.000000e+00> : vector<8x256xf32>
    %3 = tpu.matmul %1, %2, %cst {dimension_numbers = #tpu.dot_dimension_numbers<[1], [0], [0], [1], [0, 0, 1, 1], [], []>} : vector<8x32xbf16>, vector<32x256xbf16>, vector<8x256xf32> -> vector<8x256xf32>
    %c0_3 = arith.constant 0 : index
    %c0_4 = arith.constant 0 : index
    %4 = vector.load %arg4[%c0_3, %c0_4] : memref<8x256xf32, #tpu.memory_space<vmem>>, vector<1x256xf32>
    %5 = vector.broadcast %4 : vector<1x256xf32> to vector<8x256xf32>
    %6 = arith.addf %3, %5 : vector<8x256xf32>
    %cst_5 = arith.constant 0.000000e+00 : f32
    %7 = vector.broadcast %cst_5 : f32 to vector<8x256xf32>
    %8 = arith.maximumf %6, %7 : vector<8x256xf32>
    %9 = vector.extract_strided_slice %8 {offsets = [0, 0], sizes = [8, 128], strides = [1, 1]} : vector<8x256xf32> to vector<8x128xf32>
    %10 = arith.truncf %9 : vector<8x128xf32> to vector<8x128xbf16>
    %11 = vector.extract_strided_slice %8 {offsets = [0, 128], sizes = [8, 128], strides = [1, 1]} : vector<8x256xf32> to vector<8x128xf32>
    %c0_6 = arith.constant 0 : index
    %c0_7 = arith.constant 0 : index
    %12 = vector.load %arg3[%c0_6, %c0_7] : memref<128x256xbf16, #tpu.memory_space<vmem>>, vector<128x256xbf16>
    %cst_8 = arith.constant dense<0.000000e+00> : vector<8x256xf32>
    %13 = tpu.matmul %10, %12, %cst_8 {dimension_numbers = #tpu.dot_dimension_numbers<[1], [0], [0], [1], [0, 0, 1, 1], [], []>} : vector<8x128xbf16>, vector<128x256xbf16>, vector<8x256xf32> -> vector<8x256xf32>
    %c1 = arith.constant 1 : index
    %c0_9 = arith.constant 0 : index
    %14 = vector.load %arg4[%c1, %c0_9] : memref<8x256xf32, #tpu.memory_space<vmem>>, vector<1x256xf32>
    %15 = vector.broadcast %14 : vector<1x256xf32> to vector<8x256xf32>
    %16 = arith.addf %13, %15 : vector<8x256xf32>
    %17 = vector.extract_strided_slice %16 {offsets = [0, 0], sizes = [8, 128], strides = [1, 1]} : vector<8x256xf32> to vector<8x128xf32>
    %18 = vector.extract_strided_slice %16 {offsets = [0, 128], sizes = [8, 128], strides = [1, 1]} : vector<8x256xf32> to vector<8x128xf32>
    %19 = arith.negf %18 : vector<8x128xf32>
    %20 = math.exp %19 : vector<8x128xf32>
    %cst_10 = arith.constant 1.000000e+00 : f32
    %21 = vector.broadcast %cst_10 : f32 to vector<8x128xf32>
    %22 = arith.addf %21, %20 : vector<8x128xf32>
    %23 = arith.divf %21, %22 : vector<8x128xf32>
    %24 = arith.mulf %17, %23 : vector<8x128xf32>
    %25 = arith.addf %24, %11 : vector<8x128xf32>
    %cst_11 = arith.constant dense<0.000000e+00> : vector<8xf32>
    %26 = vector.multi_reduction <add>, %25, %cst_11 [1] : vector<8x128xf32> to vector<8xf32>
    %27 = vector.shape_cast %26 : vector<8xf32> to vector<8x1xf32>
    %28 = arith.mulf %25, %25 : vector<8x128xf32>
    %cst_12 = arith.constant dense<0.000000e+00> : vector<8xf32>
    %29 = vector.multi_reduction <add>, %28, %cst_12 [1] : vector<8x128xf32> to vector<8xf32>
    %30 = vector.shape_cast %29 : vector<8xf32> to vector<8x1xf32>
    %cst_13 = arith.constant 1.562500e-02 : f32
    %31 = vector.broadcast %cst_13 : f32 to vector<8x1xf32>
    %32 = arith.mulf %27, %31 : vector<8x1xf32>
    %cst_14 = arith.constant 1.562500e-02 : f32
    %33 = vector.broadcast %cst_14 : f32 to vector<8x1xf32>
    %34 = arith.mulf %30, %33 : vector<8x1xf32>
    %35 = arith.mulf %32, %32 : vector<8x1xf32>
    %36 = arith.subf %34, %35 : vector<8x1xf32>
    %cst_15 = arith.constant 0.000000e+00 : f32
    %37 = vector.broadcast %cst_15 : f32 to vector<8x1xf32>
    %38 = arith.maximumf %36, %37 : vector<8x1xf32>
    %39 = vector.broadcast %32 : vector<8x1xf32> to vector<8x128xf32>
    %40 = arith.subf %25, %39 : vector<8x128xf32>
    %cst_16 = arith.constant 9.99999974E-6 : f32
    %41 = vector.broadcast %cst_16 : f32 to vector<8x1xf32>
    %42 = arith.addf %38, %41 : vector<8x1xf32>
    %43 = math.rsqrt %42 : vector<8x1xf32>
    %44 = vector.broadcast %43 : vector<8x1xf32> to vector<8x128xf32>
    %45 = arith.mulf %40, %44 : vector<8x128xf32>
    %c2 = arith.constant 2 : index
    %c0_17 = arith.constant 0 : index
    %46 = vector.load %arg4[%c2, %c0_17] : memref<8x256xf32, #tpu.memory_space<vmem>>, vector<1x128xf32>
    %47 = vector.broadcast %46 : vector<1x128xf32> to vector<8x128xf32>
    %48 = arith.mulf %45, %47 : vector<8x128xf32>
    %c3 = arith.constant 3 : index
    %c0_18 = arith.constant 0 : index
    %49 = vector.load %arg4[%c3, %c0_18] : memref<8x256xf32, #tpu.memory_space<vmem>>, vector<1x128xf32>
    %50 = vector.broadcast %49 : vector<1x128xf32> to vector<8x128xf32>
    %51 = arith.addf %48, %50 : vector<8x128xf32>
    %c0_19 = arith.constant 0 : index
    %c0_20 = arith.constant 0 : index
    %52 = vector.load %arg5[%c0_19, %c0_20] : memref<8x128xf32, #tpu.memory_space<vmem>>, vector<8x128xf32>
    tpu.vector_store %arg5[%c0_19, %c0_20], %51 {strides = array<i32>} : memref<8x128xf32, #tpu.memory_space<vmem>>, vector<8x128xf32>,
    return
  }
  func.func @transform_0(%arg0: i32) -> (i32, i32) {
    %c0_i32 = arith.constant 0 : i32
    %c0_i32_0 = arith.constant 0 : i32
    return %arg0, %c0_i32 : i32, i32
  }
  func.func @transform_1(%arg0: i32) -> (i32, i32) {
    %c0_i32 = arith.constant 0 : i32
    %c0_i32_0 = arith.constant 0 : i32
    %c0_i32_1 = arith.constant 0 : i32
    return %c0_i32, %c0_i32_0 : i32, i32
  }
  func.func @transform_2(%arg0: i32) -> (i32, i32) {
    %c0_i32 = arith.constant 0 : i32
    %c0_i32_0 = arith.constant 0 : i32
    %c0_i32_1 = arith.constant 0 : i32
    return %c0_i32, %c0_i32_0 : i32, i32
  }
  func.func @transform_3(%arg0: i32) -> (i32, i32) {
    %c0_i32 = arith.constant 0 : i32
    %c0_i32_0 = arith.constant 0 : i32
    %c0_i32_1 = arith.constant 0 : i32
    return %c0_i32, %c0_i32_0 : i32, i32
  }
  func.func @transform_4(%arg0: i32) -> (i32, i32) {
    %c0_i32 = arith.constant 0 : i32
    %c0_i32_0 = arith.constant 0 : i32
    return %arg0, %c0_i32 : i32, i32
  }
}

</mosaic_0001>

<llo_original>
// kernel: tpu_custom_call.1
$region0: #{tpu_custom_call.1}
  #allocation0 [shape = 'u32[]', space=smem, size = 0x4, offset = 0x4, fixed_abs, tag = 'smem constant byte address 0x4 - core index']
  #allocation1 [shape = 'u32[144,128]{1,0:T(1,128)}', space=vmem, size = 0x12000, scoped, tag = 'internal scratch']
  %s0 = inlined_call_operand.hbm [shape: f32[16,32], index: 0, kind: input, shape index: {}]
  %s1 = inlined_call_operand.hbm [shape: bf16[32,256], index: 1, kind: input, shape index: {}]
  %s2 = inlined_call_operand.hbm [shape: bf16[128,256], index: 2, kind: input, shape index: {}]
  %s3 = inlined_call_operand.hbm [shape: f32[8,256], index: 3, kind: input, shape index: {}]
  %s4 = inlined_call_operand.hbm [shape: f32[16,128], index: 4, kind: output, shape index: {}]
  %s5 = sld [smem:[#allocation0]]
  $region65: #{tpu_custom_call.1} parent=0
    _
  %s7 = ssub.s32 1, %s5
  %s8 = scalar_select 0, %s7, %s5
  $region1: #{tpu_custom_call.1} parent=0
    #allocation2 [shape = 'u8[8192]{0}', space=vmem, size = 0x2000, scoped, tag = 'input window, operand 0']
    #allocation3 [shape = 's32[2]{0}', space=sflag, size = 0x8, scoped, tag = 'scoped memory for tpu_custom_call.1']
    #allocation4 [shape = 's32[2]{0}', space=sflag, size = 0x8, scoped, tag = 'scoped memory for tpu_custom_call.1']
    #allocation5 [shape = 'u8[16384]{0}', space=vmem, size = 0x4000, scoped, tag = 'input window, operand 1, single buffered']
    #allocation6 [shape = 's32[1]{0}', space=sflag, size = 0x4, scoped, tag = 'scoped memory for tpu_custom_call.1']
    #allocation7 [shape = 'u8[65536]{0}', space=vmem, size = 0x10000, scoped, tag = 'input window, operand 2, single buffered']
    #allocation8 [shape = 'u8[8192]{0}', space=vmem, size = 0x2000, scoped, tag = 'input window, operand 3, single buffered']
    #allocation9 [shape = 's32[1]{0}', space=sflag, size = 0x4, scoped, tag = 'scoped memory for tpu_custom_call.1']
    #allocation10 [shape = 'u8[8192]{0}', space=vmem, size = 0x2000, scoped, tag = 'output window, operand 0']
    %9 = vsyncpa [#allocation3], 0
    %s10 = scalar_lea.sflag [#allocation3], 1
    %11 = vsyncpa %s10, 0
    %12 = vsyncpa [#allocation6], 0
    %13 = vsyncpa [#allocation9], 0
    %14 = vsyncpa [#allocation4], 0
    %s15 = scalar_lea.sflag [#allocation4], 1
    %16 = vsyncpa %s15, 0
    loop: start=0, step=1, limit=4
    $region2: #{tpu_custom_call.1} parent=1 // loop_pre_header
      _
    $region3: #{tpu_custom_call.1} parent=1 // loop_header
      %s18 = sphi 0, %s22
      %p19 = scmp.ge.s32.totalorder %s18, 4
      %s28 = sphi 0, %s30
      %s31 = sphi 0, %s28
      %s32 = sphi 0, %s31
      %s48 = sphi 0, %s32
      %s52 = sphi 0, %s52
      %s54 = sphi 0, %s52
      %s55 = sphi 0, %s54
      %s69 = sphi 0, %s55
      %s73 = sphi 0, %s73
      %s75 = sphi 0, %s73
      %s76 = sphi 0, %s75
      %s90 = sphi 0, %s76
      %s94 = sphi 0, %s94
      %s96 = sphi 0, %s94
      %s97 = sphi 0, %s96
      %s111 = sphi 0, %s97
      %s117 = sphi 0, %s119
      %s120 = sphi 0, %s117
      %s121 = sphi 0, %s120
      %s137 = sphi 0, %s121
    $region4: #{tpu_custom_call.1} parent=1 // loop_header_branch
      %21 = sbr.rel (%p19) target = $region8
    $region5: #{tpu_custom_call.1} parent=1 // loop_body
      %s23 = ssub.s32 %s18, 1
      %s24 = ssub.s32 %s18, 2
      %s25 = sadd.s32 %s18, 1
      %s26 = ssub.s32 %s18, %s25
      %p27 = scmp.eq.s32.totalorder %s26, 0
      %s29 = sadd.s32 %s28, 1
      %s30 = scalar_select %p27, %s28, %s29
      %p33 = pneg %p27
      %p34 = scmp.eq.s32.totalorder %s18, 1
      %p35 = por %p33, %p34
      %p36 = scmp.ne.s32.totalorder %s28, %s31
      %p37 = scmp.eq.s32.totalorder %s18, 0
      %p38 = por %p36, %p37
      %p39 = scmp.ne.s32.totalorder %s28, %s31
      %p40 = scmp.eq.s32.totalorder %s23, 1
      %p41 = por %p39, %p40
      %p42 = scmp.ne.s32.totalorder %s31, %s32
      %p43 = scmp.eq.s32.totalorder %s23, 0
      %p44 = por %p42, %p43
      %p45 = scmp.ne.s32.totalorder %s31, %s32
      %p46 = scmp.eq.s32.totalorder %s24, 1
      %p47 = por %p45, %p46
      %p49 = scmp.ne.s32.totalorder %s32, %s48
      %p50 = scmp.eq.s32.totalorder %s24, 0
      %p51 = por %p49, %p50
      %s53 = sadd.s32 %s52, 1
      %p56 = scmp.eq.s32.totalorder %s18, 1
      %p57 = scmp.ne.s32.totalorder %s52, %s54
      %p58 = scmp.eq.s32.totalorder %s18, 0
      %p59 = por %p57, %p58
      %p60 = scmp.ne.s32.totalorder %s52, %s54
      %p61 = scmp.eq.s32.totalorder %s23, 1
      %p62 = por %p60, %p61
      %p63 = scmp.ne.s32.totalorder %s54, %s55
      %p64 = scmp.eq.s32.totalorder %s23, 0
      %p65 = por %p63, %p64
      %p66 = scmp.ne.s32.totalorder %s54, %s55
      %p67 = scmp.eq.s32.totalorder %s24, 1
      %p68 = por %p66, %p67
      %p70 = scmp.ne.s32.totalorder %s55, %s69
      %p71 = scmp.eq.s32.totalorder %s24, 0
      %p72 = por %p70, %p71
      %s74 = sadd.s32 %s73, 1
      %p77 = scmp.eq.s32.totalorder %s18, 1
      %p78 = scmp.ne.s32.totalorder %s73, %s75
      %p79 = scmp.eq.s32.totalorder %s18, 0
      %p80 = por %p78, %p79
      %p81 = scmp.ne.s32.totalorder %s73, %s75
      %p82 = scmp.eq.s32.totalorder %s23, 1
      %p83 = por %p81, %p82
      %p84 = scmp.ne.s32.totalorder %s75, %s76
      %p85 = scmp.eq.s32.totalorder %s23, 0
      %p86 = por %p84, %p85
      %p87 = scmp.ne.s32.totalorder %s75, %s76
      %p88 = scmp.eq.s32.totalorder %s24, 1
      %p89 = por %p87, %p88
      %p91 = scmp.ne.s32.totalorder %s76, %s90
      %p92 = scmp.eq.s32.totalorder %s24, 0
      %p93 = por %p91, %p92
      %s95 = sadd.s32 %s94, 1
      %p98 = scmp.eq.s32.totalorder %s18, 1
      %p99 = scmp.ne.s32.totalorder %s94, %s96
      %p100 = scmp.eq.s32.totalorder %s18, 0
      %p101 = por %p99, %p100
      %p102 = scmp.ne.s32.totalorder %s94, %s96
      %p103 = scmp.eq.s32.totalorder %s23, 1
      %p104 = por %p102, %p103
      %p105 = scmp.ne.s32.totalorder %s96, %s97
      %p106 = scmp.eq.s32.totalorder %s23, 0
      %p107 = por %p105, %p106
      %p108 = scmp.ne.s32.totalorder %s96, %s97
      %p109 = scmp.eq.s32.totalorder %s24, 1
      %p110 = por %p108, %p109
      %p112 = scmp.ne.s32.totalorder %s97, %s111
      %p113 = scmp.eq.s32.totalorder %s24, 0
      %p114 = por %p112, %p113
      %s115 = ssub.s32 %s18, %s25
      %p116 = scmp.eq.s32.totalorder %s115, 0
      %s118 = sadd.s32 %s117, 1
      %s119 = scalar_select %p116, %s117, %s118
      %p122 = pneg %p116
      %p123 = scmp.eq.s32.totalorder %s18, 1
      %p124 = por %p122, %p123
      %p125 = scmp.ne.s32.totalorder %s117, %s120
      %p126 = scmp.eq.s32.totalorder %s18, 0
      %p127 = por %p125, %p126
      %p128 = scmp.ne.s32.totalorder %s117, %s120
      %p129 = scmp.eq.s32.totalorder %s23, 1
      %p130 = por %p128, %p129
      %p131 = scmp.ne.s32.totalorder %s120, %s121
      %p132 = scmp.eq.s32.totalorder %s23, 0
      %p133 = por %p131, %p132
      %p134 = scmp.ne.s32.totalorder %s120, %s121
      %p135 = scmp.eq.s32.totalorder %s24, 1
      %p136 = por %p134, %p135
      %p138 = scmp.ne.s32.totalorder %s121, %s137
      %p139 = scmp.eq.s32.totalorder %s24, 0
      %p140 = por %p138, %p139
      %p141 = scmp.le.s32.totalorder 1, %s18
      %p142 = scmp.lt.s32.totalorder %s18, 3
      %p143 = pnand %p141, %p142
      %p144 = pneg %p143
      // Predicated region
      $region9: #{tpu_custom_call.1} parent=5 // pred_check
        _
      $region10: #{tpu_custom_call.1} parent=5 // pred_check_branch
        %146 = sbr.rel (%p143) target = $region12
      $region11: #{tpu_custom_call.1} parent=5 // pred_region
        %s147 = ssub.s32 %s18, 1
        // Predicated region
        $region13: #{tpu_custom_call.1} parent=11 // pred_check
          %p148 = pneg %p65
        $region14: #{tpu_custom_call.1} parent=11 // pred_check_branch
          %150 = sbr.rel (%p148) target = $region16
        $region15: #{tpu_custom_call.1} parent=11 // pred_region
          %s152 = ssub.s32 512, 512
          %153 = vsyncadd [#allocation6], %s152
          %s154 = sshll.u32 [#allocation5], 4
          %s155 = int_to_ptr.vmem [resolvable:$true] %s154
          %160 = dma.hbm_to_vmem [thread:$0]  %s1, 512, %s155, [#allocation6], 128, 128, 8
        $region16: #{tpu_custom_call.1} parent=11 // pred_fallthru
          _
        // Predicated region
        $region17: #{tpu_custom_call.1} parent=11 // pred_check
          %p161 = pneg %p86
        $region18: #{tpu_custom_call.1} parent=11 // pred_check_branch
          %163 = sbr.rel (%p161) target = $region20
        $region19: #{tpu_custom_call.1} parent=11 // pred_region
          %s165 = ssub.s32 2048, 2048
          %166 = vsyncadd [#allocation6], %s165
          %s167 = sshll.u32 [#allocation7], 4
          %s168 = int_to_ptr.vmem [resolvable:$true] %s167
          %173 = dma.hbm_to_vmem [thread:$0]  %s2, 2048, %s168, [#allocation6], 128, 128, 8
        $region20: #{tpu_custom_call.1} parent=11 // pred_fallthru
          _
        // Predicated region
        $region21: #{tpu_custom_call.1} parent=11 // pred_check
          %p174 = pneg %p107
        $region22: #{tpu_custom_call.1} parent=11 // pred_check_branch
          %176 = sbr.rel (%p174) target = $region24
        $region23: #{tpu_custom_call.1} parent=11 // pred_region
          %s178 = ssub.s32 256, 256
          %179 = vsyncadd [#allocation9], %s178
          %s181 = sshll.u32 [#allocation8], 4
          %s182 = int_to_ptr.vmem [resolvable:$true] %s181
          %184 = dma.hbm_to_vmem [thread:$0]  %s3, 256, %s182, [#allocation9]
        $region24: #{tpu_custom_call.1} parent=11 // pred_fallthru
          _
      $region12: #{tpu_custom_call.1} parent=5 // pred_fallthru
        _
      %p185 = scmp.lt.s32.totalorder %s18, 2
      // Predicated region
      $region25: #{tpu_custom_call.1} parent=5 // pred_check
        %p186 = pneg %p185
      $region26: #{tpu_custom_call.1} parent=5 // pred_check_branch
        %188 = sbr.rel (%p186) target = $region28
      $region27: #{tpu_custom_call.1} parent=5 // pred_region
        // Predicated region
        $region29: #{tpu_custom_call.1} parent=27 // pred_check
          %p189 = pneg %p38
        $region30: #{tpu_custom_call.1} parent=27 // pred_check_branch
          %191 = sbr.rel (%p189) target = $region32
        $region31: #{tpu_custom_call.1} parent=27 // pred_region
          %s192 = sand.u32 %s28, 1
          %s193 = scalar_lea.sflag [#allocation3], %s192
          %s194 = sand.u32 %s28, 1
          %s195 = smul.addr %s194, 8
          %s196 = scalar_lea.vmem [#allocation2], %s195
          %s198 = ssub.s32 128, 128
          %199 = vsyncadd %s193, %s198
          %s200 = smul.addr %s18, 128
          %s201 = scalar_lea.hbm %s0, %s200
          %s203 = sshll.u32 %s196, 4
          %s204 = int_to_ptr.vmem [resolvable:$true] %s203
          %206 = dma.hbm_to_vmem [thread:$0]  %s201, 128, %s204, %s193
        $region32: #{tpu_custom_call.1} parent=27 // pred_fallthru
          _
      $region28: #{tpu_custom_call.1} parent=5 // pred_fallthru
        _
      %p207 = scmp.le.s32.totalorder 1, %s18
      %p208 = scmp.lt.s32.totalorder %s18, 3
      %p209 = pnand %p207, %p208
      %p210 = pneg %p209
      // Predicated region
      $region33: #{tpu_custom_call.1} parent=5 // pred_check
        _
      $region34: #{tpu_custom_call.1} parent=5 // pred_check_branch
        %212 = sbr.rel (%p209) target = $region36
      $region35: #{tpu_custom_call.1} parent=5 // pred_region
        %s213 = ssub.s32 %s18, 1
        %s214 = sand.u32 %s31, 1
        %s215 = scalar_lea.sflag [#allocation3], %s214
        %s216 = sand.u32 %s31, 1
        %s217 = smul.addr %s216, 8
        %s218 = scalar_lea.vmem [#allocation2], %s217
        // Predicated region
        $region37: #{tpu_custom_call.1} parent=35 // pred_check
          %p219 = pneg %p44
        $region38: #{tpu_custom_call.1} parent=35 // pred_check_branch
          %221 = sbr.rel (%p219) target = $region40
        $region39: #{tpu_custom_call.1} parent=35 // pred_region
          %222 = dma.done %s215, 128
        $region40: #{tpu_custom_call.1} parent=35 // pred_fallthru
          _
        // Predicated region
        $region41: #{tpu_custom_call.1} parent=35 // pred_check
          %p223 = pneg %p65
        $region42: #{tpu_custom_call.1} parent=35 // pred_check_branch
          %225 = sbr.rel (%p223) target = $region44
        $region43: #{tpu_custom_call.1} parent=35 // pred_region
          %226 = dma.done [#allocation6], 512
        $region44: #{tpu_custom_call.1} parent=35 // pred_fallthru
          _
        // Predicated region
        $region45: #{tpu_custom_call.1} parent=35 // pred_check
          %p227 = pneg %p86
        $region46: #{tpu_custom_call.1} parent=35 // pred_check_branch
          %229 = sbr.rel (%p227) target = $region48
        $region47: #{tpu_custom_call.1} parent=35 // pred_region
          %230 = dma.done [#allocation6], 2048
        $region48: #{tpu_custom_call.1} parent=35 // pred_fallthru
          _
        // Predicated region
        $region49: #{tpu_custom_call.1} parent=35 // pred_check
          %p231 = pneg %p107
        $region50: #{tpu_custom_call.1} parent=35 // pred_check_branch
          %233 = sbr.rel (%p231) target = $region52
        $region51: #{tpu_custom_call.1} parent=35 // pred_region
          %234 = dma.done [#allocation9], 256
        $region52: #{tpu_custom_call.1} parent=35 // pred_fallthru
          _
        %s235 = sand.u32 %s31, 1
        %s236 = scalar_lea.sflag [#allocation3], %s235
        %s237 = sand.u32 %s31, 1
        %s238 = smul.addr %s237, 8
        %s239 = scalar_lea.vmem [#allocation2], %s238
        %p240 = pneg %p44
        %p241 = pneg %p41
        %p242 = pneg %p65
        %p243 = pneg %p62
        %p244 = pneg %p86
        %p245 = pneg %p83
        %p246 = pneg %p107
        %p247 = pneg %p104
        %p248 = pneg %p133
        %p249 = pneg %p130
        %s250 = sand.u32 %s120, 1
        %s251 = scalar_lea.sflag [#allocation4], %s250
        %s252 = sand.u32 %s120, 1
        %s253 = smul.addr %s252, 8
        %s254 = scalar_lea.vmem [#allocation10], %s253
        %v256 = vld [vmem:[%s218] sm:$0xff]
        %v257 = vpack.c.bf16 %v256, %v256
        %v258 = vld [vmem:[#allocation5] sm:$0xff]
        %v259 = vld [vmem:[#allocation5 + $0x8] sm:$0xff]
        %v260 = vld [vmem:[#allocation5 + $0x10] sm:$0xff]
        %v261 = vld [vmem:[#allocation5 + $0x18] sm:$0xff]
        %v262 = vld [vmem:[#allocation8] ss:$8 sm:$0x3]
        %v264 = vlaneseq
        %v265 = vshrl.u32 %v264, 7
        %v266 = vsub.s32 0, %v265
        %v267 = vrot.slane %v262, %v266
        %v268 = vlaneseq
        %v269 = vshrl.u32 %v268, 7
        %v270 = vsub.s32 1, %v269
        %v271 = vrot.slane %v262, %v270
        %v278 = vunpack.c.l.b16 %v258
        %v279 = vunpack.c.h.b16 %v258
        %v280 = vunpack.c.l.b16 %v259
        %v281 = vunpack.c.h.b16 %v259
        %v282 = vunpack.c.l.b16 %v260
        %v283 = vunpack.c.h.b16 %v260
        %v284 = vunpack.c.l.b16 %v261
        %v285 = vunpack.c.h.b16 %v261
        %v286 = vpack.c.b16 %v280, %v278
        %v287 = vpack.c.b16 %v281, %v279
        %v288 = vpack.c.b16 %v284, %v282
        %v289 = vpack.c.b16 %v285, %v283
        %vm294 = vcmask 261120
        %v296 = vsel %vm294, %v257, 0
        %298 = vmatprep.subr.bf16.mxu0 %v287
        %299 = vmatpush1.bf16.msra.mxu0 %v286
        %300 = vmatprep.subr.bf16.mxu0 %v289
        %301 = vmatpush1.bf16.msra.mxu0 %v288
        %302 = vmatprep.subr.bf16.mxu0 0
        %303 = vmatpush1.bf16.msra.mxu0 0
        %304 = vmatprep.subr.bf16.mxu0 0
        %305 = vmatpush1.bf16.msra.mxu0 0
        %306 = vmatprep.subr.bf16.mxu0 0
        %307 = vmatpush1.bf16.msra.mxu0 0
        %308 = vmatprep.subr.bf16.mxu0 0
        %309 = vmatpush1.bf16.msra.mxu0 0
        %310 = vmatprep.subr.bf16.mxu0 0
        %311 = vmatpush1.bf16.msra.mxu0 0
        %312 = vmatprep.subr.bf16.mxu0 0
        %313 = vmatpush1.bf16.msra.mxu0 0
        %314 = vmatprep.subr.bf16.mxu0 0
        %315 = vmatpush1.bf16.msra.mxu0 0
        %316 = vmatprep.subr.bf16.mxu0 0
        %317 = vmatpush1.bf16.msra.mxu0 0
        %318 = vmatprep.subr.bf16.mxu0 0
        %319 = vmatpush1.bf16.msra.mxu0 0
        %320 = vmatprep.subr.bf16.mxu0 0
        %321 = vmatpush1.bf16.msra.mxu0 0
        %322 = vmatprep.subr.bf16.mxu0 0
        %323 = vmatpush1.bf16.msra.mxu0 0
        %324 = vmatprep.subr.bf16.mxu0 0
        %325 = vmatpush1.bf16.msra.mxu0 0
        %326 = vmatprep.subr.bf16.mxu0 0
        %327 = vmatpush1.bf16.msra.mxu0 0
        %328 = vmatprep.subr.bf16.mxu0 0
        %329 = vmatpush1.bf16.msra.mxu0 0
        %330 = vmatprep.mubr.bf16.mxu0 0
        %331 = vmatmul.mubr.bf16.gmra.mrb[0].mxu0 %v296
        %v332 = vpop.f32.mrb[0].mxu0
        %v333 = vadd.f32 %v267, %v332
        %v334 = vpop.f32.mrb[0].mxu0
        %v335 = vadd.f32 %v271, %v334
        %v336 = vpop.f32.mrb[0].mxu0
        %v337 = vpop.f32.mrb[0].mxu0
        %338 = vdwg.mxu0
        %v339 = vmax.f32 %v333, 0.0
        %v340 = vmax.f32 %v335, 0.0
        %v341 = vpack.c.bf16 %v339, %v339
        %v342 = vld [vmem:[#allocation7] sm:$0xff]
        %v343 = vld [vmem:[#allocation7 + $0x8] sm:$0xff]
        %v344 = vld [vmem:[#allocation7 + $0x10] sm:$0xff]
        %v345 = vld [vmem:[#allocation7 + $0x18] sm:$0xff]
        %v346 = vld [vmem:[#allocation7 + $0x20] sm:$0xff]
        %v347 = vld [vmem:[#allocation7 + $0x28] sm:$0xff]
        %v348 = vld [vmem:[#allocation7 + $0x30] sm:$0xff]
        %v349 = vld [vmem:[#allocation7 + $0x38] sm:$0xff]
        %v350 = vld [vmem:[#allocation7 + $0x40] sm:$0xff]
        %v351 = vld [vmem:[#allocation7 + $0x48] sm:$0xff]
        %v352 = vld [vmem:[#allocation7 + $0x50] sm:$0xff]
        %v353 = vld [vmem:[#allocation7 + $0x58] sm:$0xff]
        %v354 = vld [vmem:[#allocation7 + $0x60] sm:$0xff]
        %v355 = vld [vmem:[#allocation7 + $0x68] sm:$0xff]
        %v356 = vld [vmem:[#allocation7 + $0x70] sm:$0xff]
        %v357 = vld [vmem:[#allocation7 + $0x78] sm:$0xff]
        %s358 = scalar_lea.vmem [#allocation8], 1
        %v359 = vld [vmem:[%s358] ss:$8 sm:$0x3]
        %v361 = vlaneseq
        %v362 = vshrl.u32 %v361, 7
        %v363 = vsub.s32 0, %v362
        %v364 = vrot.slane %v359, %v363
        %v365 = vlaneseq
        %v366 = vshrl.u32 %v365, 7
        %v367 = vsub.s32 1, %v366
        %v368 = vrot.slane %v359, %v367
        %v387 = vunpack.c.l.b16 %v342
        %v388 = vunpack.c.h.b16 %v342
        %v389 = vunpack.c.l.b16 %v343
        %v390 = vunpack.c.h.b16 %v343
        %v391 = vunpack.c.l.b16 %v344
        %v392 = vunpack.c.h.b16 %v344
        %v393 = vunpack.c.l.b16 %v345
        %v394 = vunpack.c.h.b16 %v345
        %v395 = vunpack.c.l.b16 %v346
        %v396 = vunpack.c.h.b16 %v346
        %v397 = vunpack.c.l.b16 %v347
        %v398 = vunpack.c.h.b16 %v347
        %v399 = vunpack.c.l.b16 %v348
        %v400 = vunpack.c.h.b16 %v348
        %v401 = vunpack.c.l.b16 %v349
        %v402 = vunpack.c.h.b16 %v349
        %v403 = vunpack.c.l.b16 %v350
        %v404 = vunpack.c.h.b16 %v350
        %v405 = vunpack.c.l.b16 %v351
        %v406 = vunpack.c.h.b16 %v351
        %v407 = vunpack.c.l.b16 %v352
        %v408 = vunpack.c.h.b16 %v352
        %v409 = vunpack.c.l.b16 %v353
        %v410 = vunpack.c.h.b16 %v353
        %v411 = vunpack.c.l.b16 %v354
        %v412 = vunpack.c.h.b16 %v354
        %v413 = vunpack.c.l.b16 %v355
        %v414 = vunpack.c.h.b16 %v355
        %v415 = vunpack.c.l.b16 %v356
        %v416 = vunpack.c.h.b16 %v356
        %v417 = vunpack.c.l.b16 %v357
        %v418 = vunpack.c.h.b16 %v357
        %v419 = vpack.c.b16 %v389, %v387
        %v420 = vpack.c.b16 %v390, %v388
        %v421 = vpack.c.b16 %v393, %v391
        %v422 = vpack.c.b16 %v394, %v392
        %v423 = vpack.c.b16 %v397, %v395
        %v424 = vpack.c.b16 %v398, %v396
        %v425 = vpack.c.b16 %v401, %v399
        %v426 = vpack.c.b16 %v402, %v400
        %v427 = vpack.c.b16 %v405, %v403
        %v428 = vpack.c.b16 %v406, %v404
        %v429 = vpack.c.b16 %v409, %v407
        %v430 = vpack.c.b16 %v410, %v408
        %v431 = vpack.c.b16 %v413, %v411
        %v432 = vpack.c.b16 %v414, %v412
        %v433 = vpack.c.b16 %v417, %v415
        %v434 = vpack.c.b16 %v418, %v416
        %451 = vmatprep.subr.bf16.mxu0 %v420
        %452 = vmatpush1.bf16.msra.mxu0 %v419
        %453 = vmatprep.subr.bf16.mxu0 %v422
        %454 = vmatpush1.bf16.msra.mxu0 %v421
        %455 = vmatprep.subr.bf16.mxu0 %v424
        %456 = vmatpush1.bf16.msra.mxu0 %v423
        %457 = vmatprep.subr.bf16.mxu0 %v426
        %458 = vmatpush1.bf16.msra.mxu0 %v425
        %459 = vmatprep.subr.bf16.mxu0 %v428
        %460 = vmatpush1.bf16.msra.mxu0 %v427
        %461 = vmatprep.subr.bf16.mxu0 %v430
        %462 = vmatpush1.bf16.msra.mxu0 %v429
        %463 = vmatprep.subr.bf16.mxu0 %v432
        %464 = vmatpush1.bf16.msra.mxu0 %v431
        %465 = vmatprep.subr.bf16.mxu0 %v434
        %466 = vmatpush1.bf16.msra.mxu0 %v433
        %467 = vmatprep.subr.bf16.mxu0 0
        %468 = vmatpush1.bf16.msra.mxu0 0
        %469 = vmatprep.subr.bf16.mxu0 0
        %470 = vmatpush1.bf16.msra.mxu0 0
        %471 = vmatprep.subr.bf16.mxu0 0
        %472 = vmatpush1.bf16.msra.mxu0 0
        %473 = vmatprep.subr.bf16.mxu0 0
        %474 = vmatpush1.bf16.msra.mxu0 0
        %475 = vmatprep.subr.bf16.mxu0 0
        %476 = vmatpush1.bf16.msra.mxu0 0
        %477 = vmatprep.subr.bf16.mxu0 0
        %478 = vmatpush1.bf16.msra.mxu0 0
        %479 = vmatprep.subr.bf16.mxu0 0
        %480 = vmatpush1.bf16.msra.mxu0 0
        %481 = vmatprep.subr.bf16.mxu0 0
        %482 = vmatpush1.bf16.msra.mxu0 0
        %483 = vmatprep.mubr.bf16.mxu0 0
        %484 = vmatmul.mubr.bf16.gmra.mrb[0].mxu0 %v341
        %v485 = vpop.f32.mrb[0].mxu0
        %v486 = vadd.f32 %v364, %v485
        %v487 = vpop.f32.mrb[0].mxu0
        %v488 = vadd.f32 %v368, %v487
        %v489 = vpop.f32.mrb[0].mxu0
        %v490 = vpop.f32.mrb[0].mxu0
        %491 = vdwg.mxu0
        %v492 = vxor.u32 %v488, 2147483648
        %v493 = vmul.f32 %v492, 1.442695
        %v494 = vpow.pop %v493
        %v495 = vadd.f32 %v494, 1.0
        %v496 = vrcp.pop %v495
        %v497 = vmul.f32 1.0, %v496
        %v498 = vmul.f32 %v486, %v497
        %v499 = vadd.f32 %v498, %v340
        %500 = vadd.xlane.f32.xlu0 %v499
        %v501 = vpop.xlane.xlu0 %500
        %v502 = vmul.f32 %v499, %v499
        %503 = vadd.xlane.f32.xlu0 %v502
        %v504 = vpop.xlane.xlu0 %503
        %v505 = vmul.f32 %v501, 0.015625
        %v506 = vmul.f32 %v504, 0.015625
        %v507 = vmul.f32 %v505, %v505
        %v508 = vsub.f32 %v506, %v507
        %v509 = vmax.f32 %v508, 0.0
        %v510 = vsub.f32 %v499, %v505
        %v511 = vadd.f32 %v509, 1e-05
        %v512 = vrsqrt.pop %v511
        %v513 = vmul.f32 %v510, %v512
        %v514 = vld [vmem:[#allocation8 + $0x2] ss:$0 sm:$0xff]
        %v515 = vmul.f32 %v513, %v514
        %v516 = vld [vmem:[#allocation8 + $0x3] ss:$0 sm:$0xff]
        %v517 = vadd.f32 %v515, %v516
        %518 = vst [vmem:[%s254] sm:$0xff] %v517
        %s519 = sand.u32 %s120, 1
        %s520 = scalar_lea.sflag [#allocation4], %s519
        %s521 = sand.u32 %s120, 1
        %s522 = smul.addr %s521, 8
        %s523 = scalar_lea.vmem [#allocation10], %s522
        // Predicated region
        $region53: #{tpu_custom_call.1} parent=35 // pred_check
          %p524 = pneg %p130
        $region54: #{tpu_custom_call.1} parent=35 // pred_check_branch
          %526 = sbr.rel (%p524) target = $region56
        $region55: #{tpu_custom_call.1} parent=35 // pred_region
          %s528 = ssub.s32 128, 128
          %529 = vsyncadd %s520, %s528
          %s530 = smul.addr %s23, 128
          %s531 = scalar_lea.hbm %s4, %s530
          %s533 = sshll.u32 %s523, 4
          %s534 = int_to_ptr.vmem [resolvable:$true] %s533
          %536 = dma.vmem_to_hbm [thread:$0]  %s534, 128, %s531, %s520
        $region56: #{tpu_custom_call.1} parent=35 // pred_fallthru
          _
      $region36: #{tpu_custom_call.1} parent=5 // pred_fallthru
        _
      %p537 = scmp.le.s32.totalorder 2, %s18
      // Predicated region
      $region57: #{tpu_custom_call.1} parent=5 // pred_check
        %p538 = pneg %p537
      $region58: #{tpu_custom_call.1} parent=5 // pred_check_branch
        %540 = sbr.rel (%p538) target = $region60
      $region59: #{tpu_custom_call.1} parent=5 // pred_region
        %s541 = ssub.s32 %s18, 2
        // Predicated region
        $region61: #{tpu_custom_call.1} parent=59 // pred_check
          %p542 = pneg %p136
        $region62: #{tpu_custom_call.1} parent=59 // pred_check_branch
          %544 = sbr.rel (%p542) target = $region64
        $region63: #{tpu_custom_call.1} parent=59 // pred_region
          %s545 = sand.u32 %s121, 1
          %s546 = scalar_lea.sflag [#allocation4], %s545
          %s547 = sand.u32 %s121, 1
          %s548 = smul.addr %s547, 8
          %s549 = scalar_lea.vmem [#allocation10], %s548
          %550 = dma.done %s546, 128
        $region64: #{tpu_custom_call.1} parent=59 // pred_fallthru
          _
      $region60: #{tpu_custom_call.1} parent=5 // pred_fallthru
        _
    $region6: #{tpu_custom_call.1} parent=1 // loop_footer
      %s22 = sadd.s32 1, %s18
    $region7: #{tpu_custom_call.1} parent=1 // loop_footer_branch
      %17 = sbr.rel target = $region3
    $region8: #{tpu_custom_call.1} parent=1 // loop_exit
      _
    %551 = vsyncpa [#allocation3], 1
    %s552 = scalar_lea.sflag [#allocation3], 1
    %553 = vsyncpa %s552, 1
    %554 = vsyncpa [#allocation6], 1
    %555 = vsyncpa [#allocation9], 1
    %556 = vsyncpa [#allocation4], 1
    %s557 = scalar_lea.sflag [#allocation4], 1
    %558 = vsyncpa %s557, 1

</llo_original>
